<compile_context>
chip_gen: v5e
topology: v5e:2x2
jax: 0.10.0
libtpu: 0.0.40
codegen_flags: <defaults>
</compile_context>

<pallas_src>
import math

import jax
import jax.numpy as jnp
from jax.experimental import pallas as pl
from jax.experimental.pallas import tpu as pltpu

IN_DIM = 26
HID_DIM = 128
OUT_DIM = 768


def _gelu_exact_f32(x):
    # Matches torch.nn.GELU() default (erf-based, not tanh approximation).
    return 0.5 * x * (1.0 + jax.lax.erf(x * (1.0 / math.sqrt(2.0))))


def _mlp_kernel(x_ref, w1_ref, b1_ref, w2_ref, b2_ref, o_ref):
    # x_ref : (tm, IN_DIM)  f32      w1_ref: (IN_DIM, HID_DIM) bf16  b1_ref: (1, HID_DIM) f32
    # w2_ref: (HID_DIM, OUT_DIM) bf16  b2_ref: (1, OUT_DIM) f32     o_ref : (tm, OUT_DIM)
    x = x_ref[...].astype(jnp.bfloat16)                      # bf16 MXU operand
    h = jnp.dot(x, w1_ref[...], preferred_element_type=jnp.float32) + b1_ref[...]
    h = _gelu_exact_f32(h)                                   # exact erf GELU in f32
    y = jnp.dot(h.astype(jnp.bfloat16), w2_ref[...],
                preferred_element_type=jnp.float32) + b2_ref[...]
    o_ref[...] = y.astype(o_ref.dtype)


def annotation_encoder_forward(x, w1, b1, w2, b2, *, tm=1024, out_dtype=None):
    """x: (..., IN_DIM). Returns (..., OUT_DIM) in `out_dtype` (default: x.dtype)."""
    if out_dtype is None:
        out_dtype = x.dtype

    lead_shape = x.shape[:-1]
    M = 1
    for d in lead_shape:
        M *= int(d)
    x2 = x.reshape(M, IN_DIM)

    # Row tile: multiple of 8 (sublane constraint), clamped for tiny inputs.
    tm = max(8, (tm // 8) * 8)
    m_rounded = ((M + 7) // 8) * 8
    tm = min(tm, m_rounded)
    grid = (pl.cdiv(M, tm),)

    # One-time wrapper-side casts: bf16 weights (resident across the grid), f32 biases.
    w1_b = w1.astype(jnp.bfloat16)
    w2_b = w2.astype(jnp.bfloat16)
    b1_2d = b1.reshape(1, HID_DIM).astype(jnp.float32)
    b2_2d = b2.reshape(1, OUT_DIM).astype(jnp.float32)

    in_bytes = jnp.dtype(x.dtype).itemsize
    out_bytes = jnp.dtype(out_dtype).itemsize
    weight_bytes = (IN_DIM * HID_DIM + HID_DIM * OUT_DIM) * 2 + (HID_DIM + OUT_DIM) * 4
    cost = pl.CostEstimate(
        flops=2 * M * (IN_DIM * HID_DIM + HID_DIM * OUT_DIM),
        transcendentals=M * HID_DIM,
        bytes_accessed=M * IN_DIM * in_bytes + M * OUT_DIM * out_bytes + weight_bytes,
    )

    out = pl.pallas_call(
        _mlp_kernel,
        out_shape=jax.ShapeDtypeStruct((M, OUT_DIM), out_dtype),
        grid_spec=pltpu.PrefetchScalarGridSpec(
            num_scalar_prefetch=0,
            grid=grid,
            in_specs=[
                pl.BlockSpec((tm, IN_DIM), lambda i: (i, 0)),
                pl.BlockSpec((IN_DIM, HID_DIM), lambda i: (0, 0)),   # resident
                pl.BlockSpec((1, HID_DIM), lambda i: (0, 0)),        # resident
                pl.BlockSpec((HID_DIM, OUT_DIM), lambda i: (0, 0)),  # resident
                pl.BlockSpec((1, OUT_DIM), lambda i: (0, 0)),        # resident
            ],
            out_specs=pl.BlockSpec((tm, OUT_DIM), lambda i: (i, 0)),
        ),
        compiler_params=pltpu.CompilerParams(
            dimension_semantics=("parallel",),
            vmem_limit_bytes=32 * 1024 * 1024,   # safe headroom on v5e/v6e/v7x
        ),
        cost_estimate=cost,
    )(x2, w1_b, b1_2d, w2_b, b2_2d)

    return out.reshape(*lead_shape, OUT_DIM)


def init_params(key):
    # Deterministic synthetic init mimicking nn.Linear (uniform(-1/sqrt(fan_in), +)).
    k1, k2, k3, k4 = jax.random.split(key, 4)
    lim1 = 1.0 / math.sqrt(IN_DIM)
    lim2 = 1.0 / math.sqrt(HID_DIM)
    w1 = jax.random.uniform(k1, (IN_DIM, HID_DIM), jnp.float32, -lim1, lim1)
    b1 = jax.random.uniform(k2, (HID_DIM,), jnp.float32, -lim1, lim1)
    w2 = jax.random.uniform(k3, (HID_DIM, OUT_DIM), jnp.float32, -lim2, lim2)
    b2 = jax.random.uniform(k4, (OUT_DIM,), jnp.float32, -lim2, lim2)
    return w1, b1, w2, b2


def reference_forward(x, w1, b1, w2, b2):
    # Pure-f32 reference (HIGHEST precision so it does not itself truncate to bf16).
    h = jnp.dot(x, w1, precision=jax.lax.Precision.HIGHEST) + b1
    h = 0.5 * h * (1.0 + jax.lax.erf(h / math.sqrt(2.0)))
    return jnp.dot(h, w2, precision=jax.lax.Precision.HIGHEST) + b2


def _max_abs_err(a, b):
    return float(jnp.max(jnp.abs(a.astype(jnp.float32) - b.astype(jnp.float32))))


if __name__ == "__main__":
    key = jax.random.PRNGKey(0)
    kp, kx, kx2, kx3 = jax.random.split(key, 4)
    w1, b1, w2, b2 = init_params(kp)

    # bf16-operand MXU error budget vs the f32 reference.
    TOL = 2e-2

    # Small input: batch=2, seq=8, in_dim=26 (annotation feature vectors).
    x = jax.random.normal(kx, (2, 8, IN_DIM), jnp.float32)
    out = jax.block_until_ready(annotation_encoder_forward(x, w1, b1, w2, b2))
    ref = reference_forward(x, w1, b1, w2, b2)
    assert out.shape == (2, 8, OUT_DIM), out.shape
    assert out.dtype == jnp.float32, out.dtype
    assert _max_abs_err(out, ref) < TOL, _max_abs_err(out, ref)

    # Ragged row count (M=15, not a multiple of 8) exercises the masked edge block.
    x_r = jax.random.normal(kx2, (3, 5, IN_DIM), jnp.float32)
    out_r = jax.block_until_ready(annotation_encoder_forward(x_r, w1, b1, w2, b2))
    ref_r = reference_forward(x_r, w1, b1, w2, b2)
    assert out_r.shape == (3, 5, OUT_DIM), out_r.shape
    assert _max_abs_err(out_r, ref_r) < TOL, _max_abs_err(out_r, ref_r)

    # Multi-block grid (M=2048, grid=2) + the bf16-output fast path.
    x_big = jax.random.normal(kx3, (4, 512, IN_DIM), jnp.float32)
    out_big = annotation_encoder_forward(x_big, w1, b1, w2, b2, tm=1024)
    out_bf = annotation_encoder_forward(x_big, w1, b1, w2, b2, out_dtype=jnp.bfloat16)
    jax.block_until_ready((out_big, out_bf))
    ref_big = reference_forward(x_big, w1, b1, w2, b2)
    assert out_big.shape == (4, 512, OUT_DIM), out_big.shape
    assert _max_abs_err(out_big, ref_big) < TOL, _max_abs_err(out_big, ref_big)
    assert out_bf.dtype == jnp.bfloat16, out_bf.dtype
    assert _max_abs_err(out_bf, ref_big) < 5e-2, _max_abs_err(out_bf, ref_big)

    print("KERNEL_OK")
</pallas_src>

<mosaic_0001>
module attributes {stable_mosaic.version = 11 : i64} {
  func.func @_mlp_kernel(%arg0: i32, %arg1: memref<16x26xf32, #tpu.memory_space<vmem>>, %arg2: memref<26x128xbf16, #tpu.memory_space<vmem>>, %arg3: memref<1x128xf32, #tpu.memory_space<vmem>>, %arg4: memref<128x768xbf16, #tpu.memory_space<vmem>>, %arg5: memref<1x768xf32, #tpu.memory_space<vmem>>, %arg6: memref<16x768xf32, #tpu.memory_space<vmem>>) attributes {dimension_semantics = [#tpu.dimension_semantics<parallel>], iteration_bounds = array<i64: 1>, scalar_prefetch = 0 : i64, scratch_operands = 0 : i64, tpu.core_type = #tpu.core_type<tc>, window_params = [{transform_indices = @transform_0, window_bounds = array<i64: 16, 26>}, {pipeline_mode = #tpu.pipeline_mode<synchronous>, transform_indices = @transform_1, window_bounds = array<i64: 26, 128>}, {pipeline_mode = #tpu.pipeline_mode<synchronous>, transform_indices = @transform_2, window_bounds = array<i64: 1, 128>}, {pipeline_mode = #tpu.pipeline_mode<synchronous>, transform_indices = @transform_3, window_bounds = array<i64: 128, 768>}, {pipeline_mode = #tpu.pipeline_mode<synchronous>, transform_indices = @transform_4, window_bounds = array<i64: 1, 768>}, {transform_indices = @transform_5, window_bounds = array<i64: 16, 768>}]} {
    %c0 = arith.constant 0 : index
    %c0_0 = arith.constant 0 : index
    %0 = vector.load %arg1[%c0, %c0_0] : memref<16x26xf32, #tpu.memory_space<vmem>>, vector<16x26xf32>
    %1 = arith.truncf %0 : vector<16x26xf32> to vector<16x26xbf16>
    %c0_1 = arith.constant 0 : index
    %c0_2 = arith.constant 0 : index
    %2 = vector.load %arg2[%c0_1, %c0_2] : memref<26x128xbf16, #tpu.memory_space<vmem>>, vector<26x128xbf16>
    %cst = arith.constant dense<0.000000e+00> : vector<16x128xf32>
    %3 = tpu.matmul %1, %2, %cst {dimension_numbers = #tpu.dot_dimension_numbers<[1], [0], [0], [1], [0, 0, 1, 1], [], []>} : vector<16x26xbf16>, vector<26x128xbf16>, vector<16x128xf32> -> vector<16x128xf32>
    %c0_3 = arith.constant 0 : index
    %c0_4 = arith.constant 0 : index
    %4 = vector.load %arg3[%c0_3, %c0_4] : memref<1x128xf32, #tpu.memory_space<vmem>>, vector<1x128xf32>
    %5 = vector.broadcast %4 : vector<1x128xf32> to vector<16x128xf32>
    %6 = arith.addf %3, %5 : vector<16x128xf32>
    %cst_5 = arith.constant 5.000000e-01 : f32
    %7 = vector.broadcast %cst_5 : f32 to vector<16x128xf32>
    %8 = arith.mulf %7, %6 : vector<16x128xf32>
    %cst_6 = arith.constant 0.707106769 : f32
    %9 = vector.broadcast %cst_6 : f32 to vector<16x128xf32>
    %10 = arith.mulf %6, %9 : vector<16x128xf32>
    %11 = math.erf %10 : vector<16x128xf32>
    %cst_7 = arith.constant 1.000000e+00 : f32
    %12 = vector.broadcast %cst_7 : f32 to vector<16x128xf32>
    %13 = arith.addf %12, %11 : vector<16x128xf32>
    %14 = arith.mulf %8, %13 : vector<16x128xf32>
    %15 = arith.truncf %14 : vector<16x128xf32> to vector<16x128xbf16>
    %c0_8 = arith.constant 0 : index
    %c0_9 = arith.constant 0 : index
    %16 = vector.load %arg4[%c0_8, %c0_9] : memref<128x768xbf16, #tpu.memory_space<vmem>>, vector<128x768xbf16>
    %cst_10 = arith.constant dense<0.000000e+00> : vector<16x768xf32>
    %17 = tpu.matmul %15, %16, %cst_10 {dimension_numbers = #tpu.dot_dimension_numbers<[1], [0], [0], [1], [0, 0, 1, 1], [], []>} : vector<16x128xbf16>, vector<128x768xbf16>, vector<16x768xf32> -> vector<16x768xf32>
    %c0_11 = arith.constant 0 : index
    %c0_12 = arith.constant 0 : index
    %18 = vector.load %arg5[%c0_11, %c0_12] : memref<1x768xf32, #tpu.memory_space<vmem>>, vector<1x768xf32>
    %19 = vector.broadcast %18 : vector<1x768xf32> to vector<16x768xf32>
    %20 = arith.addf %17, %19 : vector<16x768xf32>
    %c0_13 = arith.constant 0 : index
    %c0_14 = arith.constant 0 : index
    %21 = vector.load %arg6[%c0_13, %c0_14] : memref<16x768xf32, #tpu.memory_space<vmem>>, vector<16x768xf32>
    tpu.vector_store %arg6[%c0_13, %c0_14], %20 {strides = array<i32>} : memref<16x768xf32, #tpu.memory_space<vmem>>, vector<16x768xf32>,
    return
  }
  func.func @transform_0(%arg0: i32) -> (i32, i32) {
    %c0_i32 = arith.constant 0 : i32
    %c0_i32_0 = arith.constant 0 : i32
    return %arg0, %c0_i32 : i32, i32
  }
  func.func @transform_1(%arg0: i32) -> (i32, i32) {
    %c0_i32 = arith.constant 0 : i32
    %c0_i32_0 = arith.constant 0 : i32
    %c0_i32_1 = arith.constant 0 : i32
    return %c0_i32, %c0_i32_0 : i32, i32
  }
  func.func @transform_2(%arg0: i32) -> (i32, i32) {
    %c0_i32 = arith.constant 0 : i32
    %c0_i32_0 = arith.constant 0 : i32
    %c0_i32_1 = arith.constant 0 : i32
    return %c0_i32, %c0_i32_0 : i32, i32
  }
  func.func @transform_3(%arg0: i32) -> (i32, i32) {
    %c0_i32 = arith.constant 0 : i32
    %c0_i32_0 = arith.constant 0 : i32
    %c0_i32_1 = arith.constant 0 : i32
    return %c0_i32, %c0_i32_0 : i32, i32
  }
  func.func @transform_4(%arg0: i32) -> (i32, i32) {
    %c0_i32 = arith.constant 0 : i32
    %c0_i32_0 = arith.constant 0 : i32
    %c0_i32_1 = arith.constant 0 : i32
    return %c0_i32, %c0_i32_0 : i32, i32
  }
  func.func @transform_5(%arg0: i32) -> (i32, i32) {
    %c0_i32 = arith.constant 0 : i32
    %c0_i32_0 = arith.constant 0 : i32
    return %arg0, %c0_i32 : i32, i32
  }
}

</mosaic_0001>

<llo_original>
// kernel: tpu_custom_call.1
$region0: #{tpu_custom_call.1}
  #allocation0 [shape = 'u32[]', space=smem, size = 0x4, offset = 0x4, fixed_abs, tag = 'smem constant byte address 0x4 - core index']
  #allocation1 [shape = 'u32[72,128]{1,0:T(1,128)}', space=vmem, size = 0x9000, scoped, tag = 'internal scratch']
  %s0 = inlined_call_operand.hbm [shape: f32[16,26], index: 0, kind: input, shape index: {}]
  %s1 = inlined_call_operand.hbm [shape: bf16[26,128], index: 1, kind: input, shape index: {}]
  %s2 = inlined_call_operand.vmem [shape: f32[1,128], index: 2, kind: input, shape index: {}]
  %s3 = inlined_call_operand.hbm [shape: bf16[128,768], index: 3, kind: input, shape index: {}]
  %s4 = inlined_call_operand.hbm [shape: f32[1,768], index: 4, kind: input, shape index: {}]
  %s5 = inlined_call_operand.hbm [shape: f32[16,768], index: 5, kind: output, shape index: {}]
  %s6 = sld [smem:[#allocation0]]
  $region46: #{tpu_custom_call.1} parent=0
    _
  %s8 = ssub.s32 1, %s6
  %s9 = scalar_select 0, %s8, %s6
  $region1: #{tpu_custom_call.1} parent=0
    #allocation2 [shape = 'u8[8192]{0}', space=vmem, size = 0x2000, scoped, tag = 'input window, operand 0, single buffered']
    #allocation3 [shape = 's32[1]{0}', space=sflag, size = 0x4, scoped, tag = 'scoped memory for tpu_custom_call.1']
    #allocation4 [shape = 's32[1]{0}', space=sflag, size = 0x4, scoped, tag = 'scoped memory for tpu_custom_call.1']
    #allocation5 [shape = 'u8[8192]{0}', space=vmem, size = 0x2000, scoped, tag = 'input window, operand 1, single buffered']
    #allocation6 [shape = 's32[1]{0}', space=sflag, size = 0x4, scoped, tag = 'scoped memory for tpu_custom_call.1']
    #allocation7 [shape = 'u8[196608]{0}', space=vmem, size = 0x30000, scoped, tag = 'input window, operand 3, single buffered']
    #allocation8 [shape = 'u8[3072]{0}', space=vmem, size = 0xc00, scoped, tag = 'input window, operand 4, single buffered']
    #allocation9 [shape = 's32[1]{0}', space=sflag, size = 0x4, scoped, tag = 'scoped memory for tpu_custom_call.1']
    #allocation10 [shape = 'u8[49152]{0}', space=vmem, size = 0xc000, scoped, tag = 'output window, operand 0, single buffered']
    %10 = vsyncpa [#allocation3], 0
    %11 = vsyncpa [#allocation6], 0
    %12 = vsyncpa [#allocation9], 0
    %13 = vsyncpa [#allocation4], 0
    // Predicated region
    $region2: #{tpu_custom_call.1} parent=1 // pred_check
      _
    $region3: #{tpu_custom_call.1} parent=1 // pred_check_branch
      %15 = sbr.rel (0) target = $region5
    $region4: #{tpu_custom_call.1} parent=1 // pred_region
      %17 = vsyncadd [#allocation3], 0
      %s18 = sshll.u32 %s0, 4
      %s19 = int_to_ptr.hbm [resolvable:$true] %s18
      %s20 = sshll.u32 [#allocation2], 4
      %s21 = int_to_ptr.vmem [resolvable:$true] %s20
      %26 = dma.hbm_to_vmem [thread:$0]  %s19, 256, %s21, [#allocation3], 128, 128, 8
    $region5: #{tpu_custom_call.1} parent=1 // pred_fallthru
      _
    // Predicated region
    $region6: #{tpu_custom_call.1} parent=1 // pred_check
      _
    $region7: #{tpu_custom_call.1} parent=1 // pred_check_branch
      %28 = sbr.rel (0) target = $region9
    $region8: #{tpu_custom_call.1} parent=1 // pred_region
      %30 = vsyncadd [#allocation6], 0
      %s31 = sshll.u32 %s1, 4
      %s32 = int_to_ptr.hbm [resolvable:$true] %s31
      %s33 = sshll.u32 [#allocation5], 4
      %s34 = int_to_ptr.vmem [resolvable:$true] %s33
      %39 = dma.hbm_to_vmem [thread:$0]  %s32, 256, %s34, [#allocation6], 64, 64, 4
    $region9: #{tpu_custom_call.1} parent=1 // pred_fallthru
      _
    // Predicated region
    $region10: #{tpu_custom_call.1} parent=1 // pred_check
      _
    $region11: #{tpu_custom_call.1} parent=1 // pred_check_branch
      %41 = sbr.rel (0) target = $region13
    $region12: #{tpu_custom_call.1} parent=1 // pred_region
      _
    $region13: #{tpu_custom_call.1} parent=1 // pred_fallthru
      _
    // Predicated region
    $region14: #{tpu_custom_call.1} parent=1 // pred_check
      _
    $region15: #{tpu_custom_call.1} parent=1 // pred_check_branch
      %43 = sbr.rel (0) target = $region17
    $region16: #{tpu_custom_call.1} parent=1 // pred_region
      %45 = vsyncadd [#allocation6], 0
      %s46 = sshll.u32 %s3, 4
      %s47 = int_to_ptr.hbm [resolvable:$true] %s46
      %s48 = sshll.u32 [#allocation7], 4
      %s49 = int_to_ptr.vmem [resolvable:$true] %s48
      %54 = dma.hbm_to_vmem [thread:$0]  %s47, 6144, %s49, [#allocation6], 384, 384, 24
    $region17: #{tpu_custom_call.1} parent=1 // pred_fallthru
      _
    // Predicated region
    $region18: #{tpu_custom_call.1} parent=1 // pred_check
      _
    $region19: #{tpu_custom_call.1} parent=1 // pred_check_branch
      %56 = sbr.rel (0) target = $region21
    $region20: #{tpu_custom_call.1} parent=1 // pred_region
      %58 = vsyncadd [#allocation9], 0
      %s60 = sshll.u32 %s4, 4
      %s61 = int_to_ptr.hbm [resolvable:$true] %s60
      %s62 = sshll.u32 [#allocation8], 4
      %s63 = int_to_ptr.vmem [resolvable:$true] %s62
      %65 = dma.hbm_to_vmem [thread:$0]  %s61, 96, %s63, [#allocation9]
    $region21: #{tpu_custom_call.1} parent=1 // pred_fallthru
      _
    // Predicated region
    $region22: #{tpu_custom_call.1} parent=1 // pred_check
      _
    $region23: #{tpu_custom_call.1} parent=1 // pred_check_branch
      %67 = sbr.rel (0) target = $region25
    $region24: #{tpu_custom_call.1} parent=1 // pred_region
      %69 = dma.done [#allocation3], 256
    $region25: #{tpu_custom_call.1} parent=1 // pred_fallthru
      _
    // Predicated region
    $region26: #{tpu_custom_call.1} parent=1 // pred_check
      _
    $region27: #{tpu_custom_call.1} parent=1 // pred_check_branch
      %71 = sbr.rel (0) target = $region29
    $region28: #{tpu_custom_call.1} parent=1 // pred_region
      %73 = dma.done [#allocation6], 256
    $region29: #{tpu_custom_call.1} parent=1 // pred_fallthru
      _
    // Predicated region
    $region30: #{tpu_custom_call.1} parent=1 // pred_check
      _
    $region31: #{tpu_custom_call.1} parent=1 // pred_check_branch
      %75 = sbr.rel (0) target = $region33
    $region32: #{tpu_custom_call.1} parent=1 // pred_region
      %77 = dma.done [#allocation6], 6144
    $region33: #{tpu_custom_call.1} parent=1 // pred_fallthru
      _
    // Predicated region
    $region34: #{tpu_custom_call.1} parent=1 // pred_check
      _
    $region35: #{tpu_custom_call.1} parent=1 // pred_check_branch
      %79 = sbr.rel (0) target = $region37
    $region36: #{tpu_custom_call.1} parent=1 // pred_region
      %81 = dma.done [#allocation9], 96
    $region37: #{tpu_custom_call.1} parent=1 // pred_fallthru
      _
    %v83 = vld [vmem:[#allocation2] sm:$0xff]
    %v84 = vld [vmem:[#allocation2 + $0x8] sm:$0xff]
    %v85 = vpack.c.bf16 %v84, %v83
    %v86 = vld [vmem:[#allocation5] sm:$0xf]
    %v87 = vld [vmem:[#allocation5 + $0x4] sm:$0xf]
    %v88 = vld [vmem:[#allocation5 + $0x8] sm:$0xf]
    %v89 = vld [vmem:[#allocation5 + $0xc] sm:$0x1]
    %v90 = vld [vmem:[%s2] sm:$0x1]
    %v92 = vperm.slane %v90, 0
    %v98 = vunpack.c.l.b16 %v86
    %v99 = vunpack.c.l.b16 %v87
    %v100 = vunpack.c.l.b16 %v88
    %v101 = vunpack.c.l.b16 %v89
    %v102 = vpack.c.b16 %v99, %v98
    %v103 = vpack.c.b16 %v101, %v100
    %vm105 = vcmask 211968
    %v107 = vsel %vm105, %v85, 0
    %vm109 = vcmask 1044480
    %v111 = vsel %vm109, %v103, 0
    %113 = vmatpush.bf16.msra.mxu0 0
    %114 = vmatpush.bf16.msra.mxu0 0
    %115 = vmatpush.bf16.msra.mxu0 0
    %116 = vmatpush.bf16.msra.mxu0 0
    %117 = vmatpush.bf16.msra.mxu0 0
    %118 = vmatpush.bf16.msra.mxu0 0
    %119 = vmatpush.bf16.msra.mxu0 %v111
    %120 = vmatpush.bf16.msra.mxu0 %v102
    %121 = vmatmul.bf16.gmra.mxu0 %v107
    %v122 = vpop.f32.mrf.mxu0
    %v123 = vadd.f32 %v92, %v122
    %v124 = vpop.f32.mrf.mxu0
    %v125 = vadd.f32 %v92, %v124
    %126 = vdwg.mxu0
    %v127 = vmul.f32 %v123, 0.5
    %v128 = vmul.f32 %v125, 0.5
    %v129 = vmul.f32 %v123, 0.70710677
    %v130 = vmul.f32 %v125, 0.70710677
    %v131 = vmul.f32 %v129, %v129
    %v132 = vmin.f32 16.0, %v131
    %v133 = vmul.f32 %v132, 2.1237322e-06
    %v134 = vadd.f32 %v133, 0.00028619796
    %v135 = vmul.f32 %v132, %v134
    %v136 = vadd.f32 %v135, 0.0036580483
    %v137 = vmul.f32 %v132, %v136
    %v138 = vadd.f32 %v137, 0.05243302
    %v139 = vmul.f32 %v132, %v138
    %v140 = vadd.f32 %v139, 0.18741608
    %v141 = vmul.f32 %v132, %v140
    %v142 = vadd.f32 %v141, 1.1283791
    %v143 = vmul.f32 %v129, %v142
    %v144 = vmul.f32 %v132, 3.8918573e-05
    %v145 = vadd.f32 %v144, 0.001143296
    %v146 = vmul.f32 %v132, %v145
    %v147 = vadd.f32 %v146, 0.014752088
    %v148 = vmul.f32 %v132, %v147
    %v149 = vadd.f32 %v148, 0.112945676
    %v150 = vmul.f32 %v132, %v149
    %v151 = vadd.f32 %v150, 0.4994258
    %v152 = vmul.f32 %v132, %v151
    %v153 = vadd.f32 %v152, 1.0
    %v154 = vrcp.pop %v153
    %v155 = vmul.f32 %v153, %v154
    %v156 = vsub.f32 1.0, %v155
    %v157 = vmul.f32 %v154, %v156
    %v158 = vadd.f32 %v154, %v157
    %vm159 = vweird.f32 %v153
    %vm160 = vweird.f32 %v154
    %vm161 = vmor %vm159, %vm160
    %v162 = vsel %vm161, %v154, %v158
    %v163 = vand.u32 2147483647, %v153
    %vm164 = vcmp.eq.f32.partialorder %v163, 8.507059e+37
    %v165 = vand.u32 %v153, 2147483648
    %v166 = vor.u32 1.1754944e-38, %v165
    %v167 = vsel %vm164, %v166, %v162
    %v168 = vmul.f32 %v143, %v167
    %v169 = vmin.f32 %v168, 1.0
    %v170 = vmax.f32 %v169, -1.0
    %v171 = vmul.f32 %v130, %v130
    %v172 = vmin.f32 16.0, %v171
    %v173 = vmul.f32 %v172, 2.1237322e-06
    %v174 = vadd.f32 %v173, 0.00028619796
    %v175 = vmul.f32 %v172, %v174
    %v176 = vadd.f32 %v175, 0.0036580483
    %v177 = vmul.f32 %v172, %v176
    %v178 = vadd.f32 %v177, 0.05243302
    %v179 = vmul.f32 %v172, %v178
    %v180 = vadd.f32 %v179, 0.18741608
    %v181 = vmul.f32 %v172, %v180
    %v182 = vadd.f32 %v181, 1.1283791
    %v183 = vmul.f32 %v130, %v182
    %v184 = vmul.f32 %v172, 3.8918573e-05
    %v185 = vadd.f32 %v184, 0.001143296
    %v186 = vmul.f32 %v172, %v185
    %v187 = vadd.f32 %v186, 0.014752088
    %v188 = vmul.f32 %v172, %v187
    %v189 = vadd.f32 %v188, 0.112945676
    %v190 = vmul.f32 %v172, %v189
    %v191 = vadd.f32 %v190, 0.4994258
    %v192 = vmul.f32 %v172, %v191
    %v193 = vadd.f32 %v192, 1.0
    %v194 = vrcp.pop %v193
    %v195 = vmul.f32 %v193, %v194
    %v196 = vsub.f32 1.0, %v195
    %v197 = vmul.f32 %v194, %v196
    %v198 = vadd.f32 %v194, %v197
    %vm199 = vweird.f32 %v193
    %vm200 = vweird.f32 %v194
    %vm201 = vmor %vm199, %vm200
    %v202 = vsel %vm201, %v194, %v198
    %v203 = vand.u32 2147483647, %v193
    %vm204 = vcmp.eq.f32.partialorder %v203, 8.507059e+37
    %v205 = vand.u32 %v193, 2147483648
    %v206 = vor.u32 1.1754944e-38, %v205
    %v207 = vsel %vm204, %v206, %v202
    %v208 = vmul.f32 %v183, %v207
    %v209 = vmin.f32 %v208, 1.0
    %v210 = vmax.f32 %v209, -1.0
    %v211 = vadd.f32 %v170, 1.0
    %v212 = vadd.f32 %v210, 1.0
    %v213 = vmul.f32 %v127, %v211
    %v214 = vmul.f32 %v128, %v212
    %v215 = vpack.c.bf16 %v214, %v213
    %v216 = vld [vmem:[#allocation7] sm:$0xff]
    %v217 = vld [vmem:[#allocation7 + $0x8] sm:$0xff]
    %v218 = vld [vmem:[#allocation7 + $0x10] sm:$0xff]
    %v219 = vld [vmem:[#allocation7 + $0x18] sm:$0xff]
    %v220 = vld [vmem:[#allocation7 + $0x20] sm:$0xff]
    %v221 = vld [vmem:[#allocation7 + $0x28] sm:$0xff]
    %v222 = vld [vmem:[#allocation7 + $0x30] sm:$0xff]
    %v223 = vld [vmem:[#allocation7 + $0x38] sm:$0xff]
    %v224 = vld [vmem:[#allocation7 + $0x40] sm:$0xff]
    %v225 = vld [vmem:[#allocation7 + $0x48] sm:$0xff]
    %v226 = vld [vmem:[#allocation7 + $0x50] sm:$0xff]
    %v227 = vld [vmem:[#allocation7 + $0x58] sm:$0xff]
    %v228 = vld [vmem:[#allocation7 + $0x60] sm:$0xff]
    %v229 = vld [vmem:[#allocation7 + $0x68] sm:$0xff]
    %v230 = vld [vmem:[#allocation7 + $0x70] sm:$0xff]
    %v231 = vld [vmem:[#allocation7 + $0x78] sm:$0xff]
    %v232 = vld [vmem:[#allocation7 + $0x80] sm:$0xff]
    %v233 = vld [vmem:[#allocation7 + $0x88] sm:$0xff]
    %v234 = vld [vmem:[#allocation7 + $0x90] sm:$0xff]
    %v235 = vld [vmem:[#allocation7 + $0x98] sm:$0xff]
    %v236 = vld [vmem:[#allocation7 + $0xa0] sm:$0xff]
    %v237 = vld [vmem:[#allocation7 + $0xa8] sm:$0xff]
    %v238 = vld [vmem:[#allocation7 + $0xb0] sm:$0xff]
    %v239 = vld [vmem:[#allocation7 + $0xb8] sm:$0xff]
    %v240 = vld [vmem:[#allocation7 + $0xc0] sm:$0xff]
    %v241 = vld [vmem:[#allocation7 + $0xc8] sm:$0xff]
    %v242 = vld [vmem:[#allocation7 + $0xd0] sm:$0xff]
    %v243 = vld [vmem:[#allocation7 + $0xd8] sm:$0xff]
    %v244 = vld [vmem:[#allocation7 + $0xe0] sm:$0xff]
    %v245 = vld [vmem:[#allocation7 + $0xe8] sm:$0xff]
    %v246 = vld [vmem:[#allocation7 + $0xf0] sm:$0xff]
    %v247 = vld [vmem:[#allocation7 + $0xf8] sm:$0xff]
    %v248 = vld [vmem:[#allocation7 + $0x100] sm:$0xff]
    %v249 = vld [vmem:[#allocation7 + $0x108] sm:$0xff]
    %v250 = vld [vmem:[#allocation7 + $0x110] sm:$0xff]
    %v251 = vld [vmem:[#allocation7 + $0x118] sm:$0xff]
    %v252 = vld [vmem:[#allocation7 + $0x120] sm:$0xff]
    %v253 = vld [vmem:[#allocation7 + $0x128] sm:$0xff]
    %v254 = vld [vmem:[#allocation7 + $0x130] sm:$0xff]
    %v255 = vld [vmem:[#allocation7 + $0x138] sm:$0xff]
    %v256 = vld [vmem:[#allocation7 + $0x140] sm:$0xff]
    %v257 = vld [vmem:[#allocation7 + $0x148] sm:$0xff]
    %v258 = vld [vmem:[#allocation7 + $0x150] sm:$0xff]
    %v259 = vld [vmem:[#allocation7 + $0x158] sm:$0xff]
    %v260 = vld [vmem:[#allocation7 + $0x160] sm:$0xff]
    %v261 = vld [vmem:[#allocation7 + $0x168] sm:$0xff]
    %v262 = vld [vmem:[#allocation7 + $0x170] sm:$0xff]
    %v263 = vld [vmem:[#allocation7 + $0x178] sm:$0xff]
    %v264 = vld [vmem:[#allocation8] sm:$0x3f]
    %v266 = vperm.slane %v264, 0
    %v267 = vperm.slane %v264, 1
    %v268 = vperm.slane %v264, 2
    %v269 = vperm.slane %v264, 3
    %v270 = vperm.slane %v264, 4
    %v271 = vperm.slane %v264, 5
    %v326 = vunpack.c.l.b16 %v216
    %v327 = vunpack.c.h.b16 %v216
    %v328 = vunpack.c.l.b16 %v217
    %v329 = vunpack.c.h.b16 %v217
    %v330 = vunpack.c.l.b16 %v218
    %v331 = vunpack.c.h.b16 %v218
    %v332 = vunpack.c.l.b16 %v219
    %v333 = vunpack.c.h.b16 %v219
    %v334 = vunpack.c.l.b16 %v220
    %v335 = vunpack.c.h.b16 %v220
    %v336 = vunpack.c.l.b16 %v221
    %v337 = vunpack.c.h.b16 %v221
    %v338 = vunpack.c.l.b16 %v222
    %v339 = vunpack.c.h.b16 %v222
    %v340 = vunpack.c.l.b16 %v223
    %v341 = vunpack.c.h.b16 %v223
    %v342 = vunpack.c.l.b16 %v224
    %v343 = vunpack.c.h.b16 %v224
    %v344 = vunpack.c.l.b16 %v225
    %v345 = vunpack.c.h.b16 %v225
    %v346 = vunpack.c.l.b16 %v226
    %v347 = vunpack.c.h.b16 %v226
    %v348 = vunpack.c.l.b16 %v227
    %v349 = vunpack.c.h.b16 %v227
    %v350 = vunpack.c.l.b16 %v228
    %v351 = vunpack.c.h.b16 %v228
    %v352 = vunpack.c.l.b16 %v229
    %v353 = vunpack.c.h.b16 %v229
    %v354 = vunpack.c.l.b16 %v230
    %v355 = vunpack.c.h.b16 %v230
    %v356 = vunpack.c.l.b16 %v231
    %v357 = vunpack.c.h.b16 %v231
    %v358 = vunpack.c.l.b16 %v232
    %v359 = vunpack.c.h.b16 %v232
    %v360 = vunpack.c.l.b16 %v233
    %v361 = vunpack.c.h.b16 %v233
    %v362 = vunpack.c.l.b16 %v234
    %v363 = vunpack.c.h.b16 %v234
    %v364 = vunpack.c.l.b16 %v235
    %v365 = vunpack.c.h.b16 %v235
    %v366 = vunpack.c.l.b16 %v236
    %v367 = vunpack.c.h.b16 %v236
    %v368 = vunpack.c.l.b16 %v237
    %v369 = vunpack.c.h.b16 %v237
    %v370 = vunpack.c.l.b16 %v238
    %v371 = vunpack.c.h.b16 %v238
    %v372 = vunpack.c.l.b16 %v239
    %v373 = vunpack.c.h.b16 %v239
    %v374 = vunpack.c.l.b16 %v240
    %v375 = vunpack.c.h.b16 %v240
    %v376 = vunpack.c.l.b16 %v241
    %v377 = vunpack.c.h.b16 %v241
    %v378 = vunpack.c.l.b16 %v242
    %v379 = vunpack.c.h.b16 %v242
    %v380 = vunpack.c.l.b16 %v243
    %v381 = vunpack.c.h.b16 %v243
    %v382 = vunpack.c.l.b16 %v244
    %v383 = vunpack.c.h.b16 %v244
    %v384 = vunpack.c.l.b16 %v245
    %v385 = vunpack.c.h.b16 %v245
    %v386 = vunpack.c.l.b16 %v246
    %v387 = vunpack.c.h.b16 %v246
    %v388 = vunpack.c.l.b16 %v247
    %v389 = vunpack.c.h.b16 %v247
    %v390 = vunpack.c.l.b16 %v248
    %v391 = vunpack.c.h.b16 %v248
    %v392 = vunpack.c.l.b16 %v249
    %v393 = vunpack.c.h.b16 %v249
    %v394 = vunpack.c.l.b16 %v250
    %v395 = vunpack.c.h.b16 %v250
    %v396 = vunpack.c.l.b16 %v251
    %v397 = vunpack.c.h.b16 %v251
    %v398 = vunpack.c.l.b16 %v252
    %v399 = vunpack.c.h.b16 %v252
    %v400 = vunpack.c.l.b16 %v253
    %v401 = vunpack.c.h.b16 %v253
    %v402 = vunpack.c.l.b16 %v254
    %v403 = vunpack.c.h.b16 %v254
    %v404 = vunpack.c.l.b16 %v255
    %v405 = vunpack.c.h.b16 %v255
    %v406 = vunpack.c.l.b16 %v256
    %v407 = vunpack.c.h.b16 %v256
    %v408 = vunpack.c.l.b16 %v257
    %v409 = vunpack.c.h.b16 %v257
    %v410 = vunpack.c.l.b16 %v258
    %v411 = vunpack.c.h.b16 %v258
    %v412 = vunpack.c.l.b16 %v259
    %v413 = vunpack.c.h.b16 %v259
    %v414 = vunpack.c.l.b16 %v260
    %v415 = vunpack.c.h.b16 %v260
    %v416 = vunpack.c.l.b16 %v261
    %v417 = vunpack.c.h.b16 %v261
    %v418 = vunpack.c.l.b16 %v262
    %v419 = vunpack.c.h.b16 %v262
    %v420 = vunpack.c.l.b16 %v263
    %v421 = vunpack.c.h.b16 %v263
    %v422 = vpack.c.b16 %v332, %v326
    %v423 = vpack.c.b16 %v333, %v327
    %v424 = vpack.c.b16 %v334, %v328
    %v425 = vpack.c.b16 %v335, %v329
    %v426 = vpack.c.b16 %v336, %v330
    %v427 = vpack.c.b16 %v337, %v331
    %v428 = vpack.c.b16 %v344, %v338
    %v429 = vpack.c.b16 %v345, %v339
    %v430 = vpack.c.b16 %v346, %v340
    %v431 = vpack.c.b16 %v347, %v341
    %v432 = vpack.c.b16 %v348, %v342
    %v433 = vpack.c.b16 %v349, %v343
    %v434 = vpack.c.b16 %v356, %v350
    %v435 = vpack.c.b16 %v357, %v351
    %v436 = vpack.c.b16 %v358, %v352
    %v437 = vpack.c.b16 %v359, %v353
    %v438 = vpack.c.b16 %v360, %v354
    %v439 = vpack.c.b16 %v361, %v355
    %v440 = vpack.c.b16 %v368, %v362
    %v441 = vpack.c.b16 %v369, %v363
    %v442 = vpack.c.b16 %v370, %v364
    %v443 = vpack.c.b16 %v371, %v365
    %v444 = vpack.c.b16 %v372, %v366
    %v445 = vpack.c.b16 %v373, %v367
    %v446 = vpack.c.b16 %v380, %v374
    %v447 = vpack.c.b16 %v381, %v375
    %v448 = vpack.c.b16 %v382, %v376
    %v449 = vpack.c.b16 %v383, %v377
    %v450 = vpack.c.b16 %v384, %v378
    %v451 = vpack.c.b16 %v385, %v379
    %v452 = vpack.c.b16 %v392, %v386
    %v453 = vpack.c.b16 %v393, %v387
    %v454 = vpack.c.b16 %v394, %v388
    %v455 = vpack.c.b16 %v395, %v389
    %v456 = vpack.c.b16 %v396, %v390
    %v457 = vpack.c.b16 %v397, %v391
    %v458 = vpack.c.b16 %v404, %v398
    %v459 = vpack.c.b16 %v405, %v399
    %v460 = vpack.c.b16 %v406, %v400
    %v461 = vpack.c.b16 %v407, %v401
    %v462 = vpack.c.b16 %v408, %v402
    %v463 = vpack.c.b16 %v409, %v403
    %v464 = vpack.c.b16 %v416, %v410
    %v465 = vpack.c.b16 %v417, %v411
    %v466 = vpack.c.b16 %v418, %v412
    %v467 = vpack.c.b16 %v419, %v413
    %v468 = vpack.c.b16 %v420, %v414
    %v469 = vpack.c.b16 %v421, %v415
    %518 = vmatpush.bf16.msra.mxu0 %v464
    %519 = vmatpush.bf16.msra.mxu0 %v458
    %520 = vmatpush.bf16.msra.mxu0 %v452
    %521 = vmatpush.bf16.msra.mxu0 %v446
    %522 = vmatpush.bf16.msra.mxu0 %v440
    %523 = vmatpush.bf16.msra.mxu0 %v434
    %524 = vmatpush.bf16.msra.mxu0 %v428
    %525 = vmatpush.bf16.msra.mxu0 %v422
    %526 = vmatmul.bf16.gmra.mxu0 %v215
    %v527 = vpop.f32.mrf.mxu0
    %v528 = vadd.f32 %v266, %v527
    %v529 = vpop.f32.mrf.mxu0
    %v530 = vadd.f32 %v266, %v529
    %531 = vdwg.mxu0
    %532 = vmatpush.bf16.msra.mxu0 %v465
    %533 = vmatpush.bf16.msra.mxu0 %v459
    %534 = vmatpush.bf16.msra.mxu0 %v453
    %535 = vmatpush.bf16.msra.mxu0 %v447
    %536 = vmatpush.bf16.msra.mxu0 %v441
    %537 = vmatpush.bf16.msra.mxu0 %v435
    %538 = vmatpush.bf16.msra.mxu0 %v429
    %539 = vmatpush.bf16.msra.mxu0 %v423
    %540 = vmatmul.bf16.gmra.mxu0 %v215
    %v541 = vpop.f32.mrf.mxu0
    %v542 = vadd.f32 %v267, %v541
    %v543 = vpop.f32.mrf.mxu0
    %v544 = vadd.f32 %v267, %v543
    %545 = vdwg.mxu0
    %546 = vmatpush.bf16.msra.mxu0 %v466
    %547 = vmatpush.bf16.msra.mxu0 %v460
    %548 = vmatpush.bf16.msra.mxu0 %v454
    %549 = vmatpush.bf16.msra.mxu0 %v448
    %550 = vmatpush.bf16.msra.mxu0 %v442
    %551 = vmatpush.bf16.msra.mxu0 %v436
    %552 = vmatpush.bf16.msra.mxu0 %v430
    %553 = vmatpush.bf16.msra.mxu0 %v424
    %554 = vmatmul.bf16.gmra.mxu0 %v215
    %v555 = vpop.f32.mrf.mxu0
    %v556 = vadd.f32 %v268, %v555
    %v557 = vpop.f32.mrf.mxu0
    %v558 = vadd.f32 %v268, %v557
    %559 = vdwg.mxu0
    %560 = vmatpush.bf16.msra.mxu0 %v467
    %561 = vmatpush.bf16.msra.mxu0 %v461
    %562 = vmatpush.bf16.msra.mxu0 %v455
    %563 = vmatpush.bf16.msra.mxu0 %v449
    %564 = vmatpush.bf16.msra.mxu0 %v443
    %565 = vmatpush.bf16.msra.mxu0 %v437
    %566 = vmatpush.bf16.msra.mxu0 %v431
    %567 = vmatpush.bf16.msra.mxu0 %v425
    %568 = vmatmul.bf16.gmra.mxu0 %v215
    %v569 = vpop.f32.mrf.mxu0
    %v570 = vadd.f32 %v269, %v569
    %v571 = vpop.f32.mrf.mxu0
    %v572 = vadd.f32 %v269, %v571
    %573 = vdwg.mxu0
    %574 = vmatpush.bf16.msra.mxu0 %v468
    %575 = vmatpush.bf16.msra.mxu0 %v462
    %576 = vmatpush.bf16.msra.mxu0 %v456
    %577 = vmatpush.bf16.msra.mxu0 %v450
    %578 = vmatpush.bf16.msra.mxu0 %v444
    %579 = vmatpush.bf16.msra.mxu0 %v438
    %580 = vmatpush.bf16.msra.mxu0 %v432
    %581 = vmatpush.bf16.msra.mxu0 %v426
    %582 = vmatmul.bf16.gmra.mxu0 %v215
    %v583 = vpop.f32.mrf.mxu0
    %v584 = vadd.f32 %v270, %v583
    %v585 = vpop.f32.mrf.mxu0
    %v586 = vadd.f32 %v270, %v585
    %587 = vdwg.mxu0
    %588 = vmatpush.bf16.msra.mxu0 %v469
    %589 = vmatpush.bf16.msra.mxu0 %v463
    %590 = vmatpush.bf16.msra.mxu0 %v457
    %591 = vmatpush.bf16.msra.mxu0 %v451
    %592 = vmatpush.bf16.msra.mxu0 %v445
    %593 = vmatpush.bf16.msra.mxu0 %v439
    %594 = vmatpush.bf16.msra.mxu0 %v433
    %595 = vmatpush.bf16.msra.mxu0 %v427
    %596 = vmatmul.bf16.gmra.mxu0 %v215
    %v597 = vpop.f32.mrf.mxu0
    %v598 = vadd.f32 %v271, %v597
    %v599 = vpop.f32.mrf.mxu0
    %v600 = vadd.f32 %v271, %v599
    %601 = vdwg.mxu0
    %602 = vst [vmem:[#allocation10] sm:$0xff] %v528
    %603 = vst [vmem:[#allocation10 + $0x8] sm:$0xff] %v542
    %604 = vst [vmem:[#allocation10 + $0x10] sm:$0xff] %v556
    %605 = vst [vmem:[#allocation10 + $0x18] sm:$0xff] %v570
    %606 = vst [vmem:[#allocation10 + $0x20] sm:$0xff] %v584
    %607 = vst [vmem:[#allocation10 + $0x28] sm:$0xff] %v598
    %608 = vst [vmem:[#allocation10 + $0x30] sm:$0xff] %v530
    %609 = vst [vmem:[#allocation10 + $0x38] sm:$0xff] %v544
    %610 = vst [vmem:[#allocation10 + $0x40] sm:$0xff] %v558
    %611 = vst [vmem:[#allocation10 + $0x48] sm:$0xff] %v572
    %612 = vst [vmem:[#allocation10 + $0x50] sm:$0xff] %v586
    %613 = vst [vmem:[#allocation10 + $0x58] sm:$0xff] %v600
    // Predicated region
    $region38: #{tpu_custom_call.1} parent=1 // pred_check
      _
    $region39: #{tpu_custom_call.1} parent=1 // pred_check_branch
      %615 = sbr.rel (0) target = $region41
    $region40: #{tpu_custom_call.1} parent=1 // pred_region
      %617 = vsyncadd [#allocation4], 0
      %s618 = sshll.u32 [#allocation10], 4
      %s619 = int_to_ptr.vmem [resolvable:$true] %s618
      %s620 = sshll.u32 %s5, 4
      %s621 = int_to_ptr.hbm [resolvable:$true] %s620
      %626 = dma.vmem_to_hbm [thread:$0]  %s619, 1536, %s621, [#allocation4], 768, 768, 48
    $region41: #{tpu_custom_call.1} parent=1 // pred_fallthru
      _
    // Predicated region
    $region42: #{tpu_custom_call.1} parent=1 // pred_check
      _
    $region43: #{tpu_custom_call.1} parent=1 // pred_check_branch
      %628 = sbr.rel (0) target = $region45
    $region44: #{tpu_custom_call.1} parent=1 // pred_region
      %630 = dma.done [#allocation4], 1536
    $region45: #{tpu_custom_call.1} parent=1 // pred_fallthru
      _
    %631 = vsyncpa [#allocation3], 1
    %632 = vsyncpa [#allocation6], 1
    %633 = vsyncpa [#allocation9], 1
    %634 = vsyncpa [#allocation4], 1

</llo_original>
